<compile_context>
chip_gen: v6e
topology: v6e:2x2x1
jax: 0.10.0
libtpu: 0.0.40
codegen_flags: <defaults>
</compile_context>

<pallas_src>
import functools

import jax
import jax.numpy as jnp
from jax.experimental import pallas as pl
from jax.experimental.pallas import tpu as pltpu

# ---- static config (small, consistent with the module's __init__) ----------
BATCH = 8
INPUT_DIM = 32
DIM = 32
NUM_LAYERS = 2
VOCAB = 40
DROPOUT = 0.0  # eval-mode forward; nn.Dropout is identity
LANE = 128


def _decoder_kernel(num_layers, dim,
                    x_ref, state_ref,
                    *rest):
    """rest = [wfused_0, bfused_0, ..., wfused_{L-1}, bfused_{L-1},
               wchar_T, bchar_pad, char_out, state_out]"""
    n_w = 2 * num_layers
    layer_w = rest[:n_w]
    wchar_ref, bchar_ref = rest[n_w], rest[n_w + 1]
    char_out, state_out = rest[n_w + 2:]

    state = state_ref[...]                       # (B, 2*L*dim) lane-dense slab
    inp = x_ref[...]                             # (B, input_dim)

    h_cols = []
    c_cols = []
    for l in range(num_layers):
        wfused = layer_w[2 * l][...]             # (in_feat + dim, 4*dim)
        bfused = layer_w[2 * l + 1][...]         # (1, 4*dim)

        h_prev = state[:, l * dim:(l + 1) * dim]                       # (B, dim)
        c_prev = state[:, (num_layers + l) * dim:(num_layers + l + 1) * dim]

        # Fused input: one MXU push per layer instead of two.
        zin = jnp.concatenate([inp, h_prev], axis=1)                   # (B, in+dim)
        gates = jnp.dot(zin, wfused,
                        preferred_element_type=jnp.float32) + bfused   # (B, 4*dim)

        # Full-vreg nonlinearity: single tanh pass on the EUP, then VPU
        # scale/shift + per-lane select.  PyTorch gate order is [i, f, g, o];
        # only the g block (lanes [2*dim, 3*dim)) uses tanh, the rest sigmoid,
        # with sigmoid(x) = 0.5 * tanh(0.5 * x) + 0.5.
        lane = jax.lax.broadcasted_iota(jnp.int32, gates.shape, 1)
        is_g = (lane >= 2 * dim) & (lane < 3 * dim)
        t = jnp.tanh(jnp.where(is_g, gates, 0.5 * gates))
        act = jnp.where(is_g, t, 0.5 * t + 0.5)

        i_g = act[:, 0 * dim:1 * dim]
        f_g = act[:, 1 * dim:2 * dim]
        g_g = act[:, 2 * dim:3 * dim]
        o_g = act[:, 3 * dim:4 * dim]

        c_new = f_g * c_prev + i_g * g_g
        h_new = o_g * jnp.tanh(c_new)

        h_cols.append(h_new)
        c_cols.append(c_new)
        inp = h_new                              # feed next layer

    # Single lane-dense (8, 128) store for all h/c state.
    state_out[...] = jnp.concatenate(h_cols + c_cols, axis=1)

    # char_trans: Linear(dim, vocab), weight pre-transposed & lane-padded to 128.
    char_out[...] = (jnp.dot(inp, wchar_ref[...],
                             preferred_element_type=jnp.float32)
                     + bchar_ref[...])


def decoder_forward(x, h0, c0, layer_weights, w_char, b_char):
    """layer_weights: flat list [wih_0, whh_0, bih_0, bhh_0, wih_1, ...]
    in PyTorch layout (W_ih (4*dim, in_feat), W_hh (4*dim, dim))."""
    num_layers, bs, dim = h0.shape
    vocab = w_char.shape[0]
    vocab_pad = pl.cdiv(vocab, LANE) * LANE

    # --- host-side weight packing (would be done once in a real decoder) ---
    fused = []
    for l in range(num_layers):
        wih, whh, bih, bhh = layer_weights[4 * l: 4 * l + 4]
        wf = jnp.concatenate([wih.T, whh.T], axis=0)          # (in_feat+dim, 4*dim)
        bf = (jnp.reshape(bih, (1, -1)) + jnp.reshape(bhh, (1, -1)))
        fused += [wf, bf]

    w_char_t = jnp.zeros((dim, vocab_pad), jnp.float32).at[:, :vocab].set(w_char.T)
    b_char_p = jnp.zeros((1, vocab_pad), jnp.float32).at[:, :vocab].set(
        jnp.reshape(b_char, (1, -1)))

    # Pack state into one lane-dense slab: [h_0 | ... | h_{L-1} | c_0 | ... ]
    state_in = jnp.concatenate(
        [h0[l] for l in range(num_layers)] + [c0[l] for l in range(num_layers)],
        axis=1)                                               # (B, 2*L*dim)

    vmem = pl.BlockSpec(memory_space=pltpu.MemorySpace.VMEM)
    n_in = 2 + len(fused) + 2

    kernel = functools.partial(_decoder_kernel, num_layers, dim)
    char_p, state_out = pl.pallas_call(
        kernel,
        out_shape=(
            jax.ShapeDtypeStruct((bs, vocab_pad), jnp.float32),          # logits (padded)
            jax.ShapeDtypeStruct((bs, 2 * num_layers * dim), jnp.float32),  # packed h|c
        ),
        in_specs=[vmem] * n_in,
        out_specs=(vmem, vmem),
    )(x, state_in, *fused, w_char_t, b_char_p)

    char = char_p[:, :vocab]
    h_new = state_out[:, :num_layers * dim].reshape(
        bs, num_layers, dim).transpose(1, 0, 2)
    c_new = state_out[:, num_layers * dim:].reshape(
        bs, num_layers, dim).transpose(1, 0, 2)
    lstm_out = state_out[:, (num_layers - 1) * dim:num_layers * dim]
    return char, lstm_out, h_new, c_new


# ------------------------------ reference -----------------------------------
def decoder_forward_ref(x, h0, c0, layer_weights, w_char, b_char):
    dim = h0.shape[-1]
    inp = x
    h_new, c_new = [], []
    for l in range(h0.shape[0]):
        wih, whh, bih, bhh = layer_weights[4 * l: 4 * l + 4]
        gates = inp @ wih.T + h0[l] @ whh.T + bih + bhh
        i_g = jax.nn.sigmoid(gates[:, 0 * dim:1 * dim])
        f_g = jax.nn.sigmoid(gates[:, 1 * dim:2 * dim])
        g_g = jnp.tanh(gates[:, 2 * dim:3 * dim])
        o_g = jax.nn.sigmoid(gates[:, 3 * dim:4 * dim])
        c = f_g * c0[l] + i_g * g_g
        h = o_g * jnp.tanh(c)
        h_new.append(h)
        c_new.append(c)
        inp = h
    char = inp @ w_char.T + b_char
    return char, inp, jnp.stack(h_new), jnp.stack(c_new)


# ------------------------------ main -----------------------------------------
if __name__ == "__main__":
    key = jax.random.PRNGKey(0)

    def uniform(key, shape, bound):
        return jax.random.uniform(key, shape, jnp.float32, -bound, bound)

    bound = 1.0 / jnp.sqrt(DIM)

    # Deterministic parameter init (PyTorch-style U(-1/sqrt(dim), 1/sqrt(dim)))
    layer_weights = []
    for l in range(NUM_LAYERS):
        in_feat = INPUT_DIM if l == 0 else DIM
        key, k1, k2, k3, k4 = jax.random.split(key, 5)
        layer_weights += [
            uniform(k1, (4 * DIM, in_feat), bound),  # W_ih_l
            uniform(k2, (4 * DIM, DIM), bound),      # W_hh_l
            uniform(k3, (1, 4 * DIM), bound),        # b_ih_l
            uniform(k4, (1, 4 * DIM), bound),        # b_hh_l
        ]
    key, k1, k2, kx = jax.random.split(key, 4)
    w_char = uniform(k1, (VOCAB, DIM), bound)
    b_char = uniform(k2, (1, VOCAB), bound)

    # init_state(bs): zero hidden/cell states
    h0 = jnp.zeros((NUM_LAYERS, BATCH, DIM), jnp.float32)
    c0 = jnp.zeros((NUM_LAYERS, BATCH, DIM), jnp.float32)

    x = jax.random.normal(kx, (BATCH, INPUT_DIM), jnp.float32)

    char, lstm_out, h_new, c_new = jax.block_until_ready(
        decoder_forward(x, h0, c0, layer_weights, w_char, b_char))

    char_r, out_r, h_r, c_r = decoder_forward_ref(
        x, h0, c0, layer_weights, w_char, b_char)

    assert char.shape == (BATCH, VOCAB) and lstm_out.shape == (BATCH, DIM)
    assert jnp.allclose(char, char_r, atol=1e-5, rtol=1e-5)
    assert jnp.allclose(lstm_out, out_r, atol=1e-5, rtol=1e-5)
    assert jnp.allclose(h_new, h_r, atol=1e-5, rtol=1e-5)
    assert jnp.allclose(c_new, c_r, atol=1e-5, rtol=1e-5)

    print("KERNEL_OK")
</pallas_src>

<mosaic_0001>
module attributes {stable_mosaic.version = 11 : i64} {
  func.func @_decoder_kernel(%arg0: memref<8x32xf32, #tpu.memory_space<vmem>>, %arg1: memref<8x128xf32, #tpu.memory_space<vmem>>, %arg2: memref<64x128xf32, #tpu.memory_space<vmem>>, %arg3: memref<1x128xf32, #tpu.memory_space<vmem>>, %arg4: memref<64x128xf32, #tpu.memory_space<vmem>>, %arg5: memref<1x128xf32, #tpu.memory_space<vmem>>, %arg6: memref<32x128xf32, #tpu.memory_space<vmem>>, %arg7: memref<1x128xf32, #tpu.memory_space<vmem>>, %arg8: memref<8x128xf32, #tpu.memory_space<vmem>>, %arg9: memref<8x128xf32, #tpu.memory_space<vmem>>) attributes {dimension_semantics = [], scalar_prefetch = 0 : i64, scratch_operands = 0 : i64, tpu.core_type = #tpu.core_type<tc>} {
    %c0 = arith.constant 0 : index
    %c0_0 = arith.constant 0 : index
    %0 = vector.load %arg1[%c0, %c0_0] : memref<8x128xf32, #tpu.memory_space<vmem>>, vector<8x128xf32>
    %c0_1 = arith.constant 0 : index
    %c0_2 = arith.constant 0 : index
    %1 = vector.load %arg0[%c0_1, %c0_2] : memref<8x32xf32, #tpu.memory_space<vmem>>, vector<8x32xf32>
    %c0_3 = arith.constant 0 : index
    %c0_4 = arith.constant 0 : index
    %2 = vector.load %arg2[%c0_3, %c0_4] : memref<64x128xf32, #tpu.memory_space<vmem>>, vector<64x128xf32>
    %c0_5 = arith.constant 0 : index
    %c0_6 = arith.constant 0 : index
    %3 = vector.load %arg3[%c0_5, %c0_6] : memref<1x128xf32, #tpu.memory_space<vmem>>, vector<1x128xf32>
    %4 = vector.extract_strided_slice %0 {offsets = [0, 0], sizes = [8, 32], strides = [1, 1]} : vector<8x128xf32> to vector<8x32xf32>
    %5 = vector.extract_strided_slice %0 {offsets = [0, 64], sizes = [8, 32], strides = [1, 1]} : vector<8x128xf32> to vector<8x32xf32>
    %6 = tpu.concatenate %1, %4 in 1 : vector<8x32xf32>, vector<8x32xf32> -> vector<8x64xf32>
    %cst = arith.constant dense<0.000000e+00> : vector<8x128xf32>
    %7 = tpu.matmul %6, %2, %cst {dimension_numbers = #tpu.dot_dimension_numbers<[1], [0], [0], [1], [0, 0, 1, 1], [], []>} : vector<8x64xf32>, vector<64x128xf32>, vector<8x128xf32> -> vector<8x128xf32>
    %8 = vector.broadcast %3 : vector<1x128xf32> to vector<8x128xf32>
    %9 = arith.addf %7, %8 : vector<8x128xf32>
    %10 = tpu.iota {dimensions = array<i32: 1>} : vector<8x128xi32>
    %c64_i32 = arith.constant 64 : i32
    %11 = vector.broadcast %c64_i32 : i32 to vector<8x128xi32>
    %12 = arith.cmpi sge, %10, %11 : vector<8x128xi32>
    %c96_i32 = arith.constant 96 : i32
    %13 = vector.broadcast %c96_i32 : i32 to vector<8x128xi32>
    %14 = arith.cmpi slt, %10, %13 : vector<8x128xi32>
    %15 = arith.andi %12, %14 : vector<8x128xi1>
    %cst_7 = arith.constant 5.000000e-01 : f32
    %16 = vector.broadcast %cst_7 : f32 to vector<8x128xf32>
    %17 = arith.mulf %16, %9 : vector<8x128xf32>
    %18 = arith.select %15, %9, %17 : vector<8x128xi1>, vector<8x128xf32>
    %19 = math.tanh %18 : vector<8x128xf32>
    %cst_8 = arith.constant 5.000000e-01 : f32
    %20 = vector.broadcast %cst_8 : f32 to vector<8x128xf32>
    %21 = arith.mulf %20, %19 : vector<8x128xf32>
    %cst_9 = arith.constant 5.000000e-01 : f32
    %22 = vector.broadcast %cst_9 : f32 to vector<8x128xf32>
    %23 = arith.addf %21, %22 : vector<8x128xf32>
    %24 = arith.select %15, %19, %23 : vector<8x128xi1>, vector<8x128xf32>
    %25 = vector.extract_strided_slice %24 {offsets = [0, 0], sizes = [8, 32], strides = [1, 1]} : vector<8x128xf32> to vector<8x32xf32>
    %26 = vector.extract_strided_slice %24 {offsets = [0, 32], sizes = [8, 32], strides = [1, 1]} : vector<8x128xf32> to vector<8x32xf32>
    %27 = vector.extract_strided_slice %24 {offsets = [0, 64], sizes = [8, 32], strides = [1, 1]} : vector<8x128xf32> to vector<8x32xf32>
    %28 = vector.extract_strided_slice %24 {offsets = [0, 96], sizes = [8, 32], strides = [1, 1]} : vector<8x128xf32> to vector<8x32xf32>
    %29 = arith.mulf %26, %5 : vector<8x32xf32>
    %30 = arith.mulf %25, %27 : vector<8x32xf32>
    %31 = arith.addf %29, %30 : vector<8x32xf32>
    %32 = math.tanh %31 : vector<8x32xf32>
    %33 = arith.mulf %28, %32 : vector<8x32xf32>
    %c0_10 = arith.constant 0 : index
    %c0_11 = arith.constant 0 : index
    %34 = vector.load %arg4[%c0_10, %c0_11] : memref<64x128xf32, #tpu.memory_space<vmem>>, vector<64x128xf32>
    %c0_12 = arith.constant 0 : index
    %c0_13 = arith.constant 0 : index
    %35 = vector.load %arg5[%c0_12, %c0_13] : memref<1x128xf32, #tpu.memory_space<vmem>>, vector<1x128xf32>
    %36 = vector.extract_strided_slice %0 {offsets = [0, 32], sizes = [8, 32], strides = [1, 1]} : vector<8x128xf32> to vector<8x32xf32>
    %37 = vector.extract_strided_slice %0 {offsets = [0, 96], sizes = [8, 32], strides = [1, 1]} : vector<8x128xf32> to vector<8x32xf32>
    %38 = tpu.concatenate %33, %36 in 1 : vector<8x32xf32>, vector<8x32xf32> -> vector<8x64xf32>
    %cst_14 = arith.constant dense<0.000000e+00> : vector<8x128xf32>
    %39 = tpu.matmul %38, %34, %cst_14 {dimension_numbers = #tpu.dot_dimension_numbers<[1], [0], [0], [1], [0, 0, 1, 1], [], []>} : vector<8x64xf32>, vector<64x128xf32>, vector<8x128xf32> -> vector<8x128xf32>
    %40 = vector.broadcast %35 : vector<1x128xf32> to vector<8x128xf32>
    %41 = arith.addf %39, %40 : vector<8x128xf32>
    %42 = tpu.iota {dimensions = array<i32: 1>} : vector<8x128xi32>
    %c64_i32_15 = arith.constant 64 : i32
    %43 = vector.broadcast %c64_i32_15 : i32 to vector<8x128xi32>
    %44 = arith.cmpi sge, %42, %43 : vector<8x128xi32>
    %c96_i32_16 = arith.constant 96 : i32
    %45 = vector.broadcast %c96_i32_16 : i32 to vector<8x128xi32>
    %46 = arith.cmpi slt, %42, %45 : vector<8x128xi32>
    %47 = arith.andi %44, %46 : vector<8x128xi1>
    %cst_17 = arith.constant 5.000000e-01 : f32
    %48 = vector.broadcast %cst_17 : f32 to vector<8x128xf32>
    %49 = arith.mulf %48, %41 : vector<8x128xf32>
    %50 = arith.select %47, %41, %49 : vector<8x128xi1>, vector<8x128xf32>
    %51 = math.tanh %50 : vector<8x128xf32>
    %cst_18 = arith.constant 5.000000e-01 : f32
    %52 = vector.broadcast %cst_18 : f32 to vector<8x128xf32>
    %53 = arith.mulf %52, %51 : vector<8x128xf32>
    %cst_19 = arith.constant 5.000000e-01 : f32
    %54 = vector.broadcast %cst_19 : f32 to vector<8x128xf32>
    %55 = arith.addf %53, %54 : vector<8x128xf32>
    %56 = arith.select %47, %51, %55 : vector<8x128xi1>, vector<8x128xf32>
    %57 = vector.extract_strided_slice %56 {offsets = [0, 0], sizes = [8, 32], strides = [1, 1]} : vector<8x128xf32> to vector<8x32xf32>
    %58 = vector.extract_strided_slice %56 {offsets = [0, 32], sizes = [8, 32], strides = [1, 1]} : vector<8x128xf32> to vector<8x32xf32>
    %59 = vector.extract_strided_slice %56 {offsets = [0, 64], sizes = [8, 32], strides = [1, 1]} : vector<8x128xf32> to vector<8x32xf32>
    %60 = vector.extract_strided_slice %56 {offsets = [0, 96], sizes = [8, 32], strides = [1, 1]} : vector<8x128xf32> to vector<8x32xf32>
    %61 = arith.mulf %58, %37 : vector<8x32xf32>
    %62 = arith.mulf %57, %59 : vector<8x32xf32>
    %63 = arith.addf %61, %62 : vector<8x32xf32>
    %64 = math.tanh %63 : vector<8x32xf32>
    %65 = arith.mulf %60, %64 : vector<8x32xf32>
    %66 = tpu.concatenate %33, %65, %31, %63 in 1 : vector<8x32xf32>, vector<8x32xf32>, vector<8x32xf32>, vector<8x32xf32> -> vector<8x128xf32>
    %c0_20 = arith.constant 0 : index
    %c0_21 = arith.constant 0 : index
    %67 = vector.load %arg9[%c0_20, %c0_21] : memref<8x128xf32, #tpu.memory_space<vmem>>, vector<8x128xf32>
    tpu.vector_store %arg9[%c0_20, %c0_21], %66 {strides = array<i32>} : memref<8x128xf32, #tpu.memory_space<vmem>>, vector<8x128xf32>,
    %c0_22 = arith.constant 0 : index
    %c0_23 = arith.constant 0 : index
    %68 = vector.load %arg6[%c0_22, %c0_23] : memref<32x128xf32, #tpu.memory_space<vmem>>, vector<32x128xf32>
    %cst_24 = arith.constant dense<0.000000e+00> : vector<8x128xf32>
    %69 = tpu.matmul %65, %68, %cst_24 {dimension_numbers = #tpu.dot_dimension_numbers<[1], [0], [0], [1], [0, 0, 1, 1], [], []>} : vector<8x32xf32>, vector<32x128xf32>, vector<8x128xf32> -> vector<8x128xf32>
    %c0_25 = arith.constant 0 : index
    %c0_26 = arith.constant 0 : index
    %70 = vector.load %arg7[%c0_25, %c0_26] : memref<1x128xf32, #tpu.memory_space<vmem>>, vector<1x128xf32>
    %71 = vector.broadcast %70 : vector<1x128xf32> to vector<8x128xf32>
    %72 = arith.addf %69, %71 : vector<8x128xf32>
    %c0_27 = arith.constant 0 : index
    %c0_28 = arith.constant 0 : index
    %73 = vector.load %arg8[%c0_27, %c0_28] : memref<8x128xf32, #tpu.memory_space<vmem>>, vector<8x128xf32>
    tpu.vector_store %arg8[%c0_27, %c0_28], %72 {strides = array<i32>} : memref<8x128xf32, #tpu.memory_space<vmem>>, vector<8x128xf32>,
    return
  }
}

</mosaic_0001>

<llo_original>
// kernel: tpu_custom_call.1
$region0: #{tpu_custom_call.1}
  #allocation0 [shape = 'u32[]', space=smem, size = 0x4, offset = 0x4, fixed_abs, tag = 'smem constant byte address 0x4 - core index']
  #allocation1 [shape = 'u32[144,128]{1,0:T(1,128)}', space=vmem, size = 0x12000, scoped, tag = 'internal scratch']
  %s0 = inlined_call_operand.hbm [shape: f32[8,32], index: 0, kind: input, shape index: {}]
  %s1 = inlined_call_operand.hbm [shape: f32[8,128], index: 1, kind: input, shape index: {}]
  %s2 = inlined_call_operand.hbm [shape: f32[64,128], index: 2, kind: input, shape index: {}]
  %s3 = inlined_call_operand.vmem [shape: f32[1,128], index: 3, kind: input, shape index: {}]
  %s4 = inlined_call_operand.hbm [shape: f32[64,128], index: 4, kind: input, shape index: {}]
  %s5 = inlined_call_operand.vmem [shape: f32[1,128], index: 5, kind: input, shape index: {}]
  %s6 = inlined_call_operand.hbm [shape: f32[32,128], index: 6, kind: input, shape index: {}]
  %s7 = inlined_call_operand.vmem [shape: f32[1,128], index: 7, kind: input, shape index: {}]
  %s8 = inlined_call_operand.hbm [shape: f32[8,128], index: 8, kind: output, shape index: {0}]
  %s9 = inlined_call_operand.hbm [shape: f32[8,128], index: 9, kind: output, shape index: {1}]
  %10 = xla_tuple %s8, %s9
  %s11 = sld [smem:[#allocation0]]
  $region70: #{tpu_custom_call.1} parent=0
    _
  %s13 = ssub.s32 1, %s11
  %s14 = scalar_select 0, %s13, %s11
  $region1: #{tpu_custom_call.1} parent=0
    #allocation2 [shape = 'u8[4096]{0}', space=vmem, size = 0x1000, scoped, tag = 'input window, operand 0, single buffered']
    #allocation3 [shape = 's32[1]{0}', space=sflag, size = 0x4, scoped, tag = 'scoped memory for tpu_custom_call.1']
    #allocation4 [shape = 's32[1]{0}', space=sflag, size = 0x4, scoped, tag = 'scoped memory for tpu_custom_call.1']
    #allocation5 [shape = 'u8[4096]{0}', space=vmem, size = 0x1000, scoped, tag = 'input window, operand 1, single buffered']
    #allocation6 [shape = 's32[1]{0}', space=sflag, size = 0x4, scoped, tag = 'scoped memory for tpu_custom_call.1']
    #allocation7 [shape = 'u8[32768]{0}', space=vmem, size = 0x8000, scoped, tag = 'input window, operand 2, single buffered']
    #allocation8 [shape = 'u8[32768]{0}', space=vmem, size = 0x8000, scoped, tag = 'input window, operand 4, single buffered']
    #allocation9 [shape = 's32[1]{0}', space=sflag, size = 0x4, scoped, tag = 'scoped memory for tpu_custom_call.1']
    #allocation10 [shape = 'u8[16384]{0}', space=vmem, size = 0x4000, scoped, tag = 'input window, operand 6, single buffered']
    #allocation11 [shape = 'u8[4096]{0}', space=vmem, size = 0x1000, scoped, tag = 'output window, operand 0, single buffered']
    #allocation12 [shape = 'u8[4096]{0}', space=vmem, size = 0x1000, scoped, tag = 'output window, operand 1, single buffered']
    #allocation13 [shape = 's32[1]{0}', space=sflag, size = 0x4, scoped, tag = 'scoped memory for tpu_custom_call.1']
    %15 = vsyncpa [#allocation3], 0
    %16 = vsyncpa [#allocation6], 0
    %17 = vsyncpa [#allocation9], 0
    %18 = vsyncpa [#allocation4], 0
    %19 = vsyncpa [#allocation13], 0
    // Predicated region
    $region2: #{tpu_custom_call.1} parent=1 // pred_check
      _
    $region3: #{tpu_custom_call.1} parent=1 // pred_check_branch
      %21 = sbr.rel (0) target = $region5
    $region4: #{tpu_custom_call.1} parent=1 // pred_region
      %s23 = ssub.s32 128, 128
      %24 = vsyncadd [#allocation3], %s23
      %s26 = sshll.u32 [#allocation2], 4
      %s27 = int_to_ptr.vmem [resolvable:$true] %s26
      %29 = dma.hbm_to_vmem [thread:$0]  %s0, 128, %s27, [#allocation3]
    $region5: #{tpu_custom_call.1} parent=1 // pred_fallthru
      _
    // Predicated region
    $region6: #{tpu_custom_call.1} parent=1 // pred_check
      _
    $region7: #{tpu_custom_call.1} parent=1 // pred_check_branch
      %31 = sbr.rel (0) target = $region9
    $region8: #{tpu_custom_call.1} parent=1 // pred_region
      %s33 = ssub.s32 128, 128
      %34 = vsyncadd [#allocation6], %s33
      %s36 = sshll.u32 [#allocation5], 4
      %s37 = int_to_ptr.vmem [resolvable:$true] %s36
      %39 = dma.hbm_to_vmem [thread:$0]  %s1, 128, %s37, [#allocation6]
    $region9: #{tpu_custom_call.1} parent=1 // pred_fallthru
      _
    // Predicated region
    $region10: #{tpu_custom_call.1} parent=1 // pred_check
      _
    $region11: #{tpu_custom_call.1} parent=1 // pred_check_branch
      %41 = sbr.rel (0) target = $region13
    $region12: #{tpu_custom_call.1} parent=1 // pred_region
      %s43 = ssub.s32 1024, 1024
      %44 = vsyncadd [#allocation6], %s43
      %s45 = sshll.u32 [#allocation7], 4
      %s46 = int_to_ptr.vmem [resolvable:$true] %s45
      %51 = dma.hbm_to_vmem [thread:$0]  %s2, 1024, %s46, [#allocation6], 128, 128, 8
    $region13: #{tpu_custom_call.1} parent=1 // pred_fallthru
      _
    // Predicated region
    $region14: #{tpu_custom_call.1} parent=1 // pred_check
      _
    $region15: #{tpu_custom_call.1} parent=1 // pred_check_branch
      %53 = sbr.rel (0) target = $region17
    $region16: #{tpu_custom_call.1} parent=1 // pred_region
      _
    $region17: #{tpu_custom_call.1} parent=1 // pred_fallthru
      _
    // Predicated region
    $region18: #{tpu_custom_call.1} parent=1 // pred_check
      _
    $region19: #{tpu_custom_call.1} parent=1 // pred_check_branch
      %55 = sbr.rel (0) target = $region21
    $region20: #{tpu_custom_call.1} parent=1 // pred_region
      %s57 = ssub.s32 1024, 1024
      %58 = vsyncadd [#allocation9], %s57
      %s59 = sshll.u32 [#allocation8], 4
      %s60 = int_to_ptr.vmem [resolvable:$true] %s59
      %65 = dma.hbm_to_vmem [thread:$0]  %s4, 1024, %s60, [#allocation9], 128, 128, 8
    $region21: #{tpu_custom_call.1} parent=1 // pred_fallthru
      _
    // Predicated region
    $region22: #{tpu_custom_call.1} parent=1 // pred_check
      _
    $region23: #{tpu_custom_call.1} parent=1 // pred_check_branch
      %67 = sbr.rel (0) target = $region25
    $region24: #{tpu_custom_call.1} parent=1 // pred_region
      _
    $region25: #{tpu_custom_call.1} parent=1 // pred_fallthru
      _
    // Predicated region
    $region26: #{tpu_custom_call.1} parent=1 // pred_check
      _
    $region27: #{tpu_custom_call.1} parent=1 // pred_check_branch
      %69 = sbr.rel (0) target = $region29
    $region28: #{tpu_custom_call.1} parent=1 // pred_region
      %s71 = ssub.s32 512, 512
      %72 = vsyncadd [#allocation9], %s71
      %s73 = sshll.u32 [#allocation10], 4
      %s74 = int_to_ptr.vmem [resolvable:$true] %s73
      %79 = dma.hbm_to_vmem [thread:$0]  %s6, 512, %s74, [#allocation9], 128, 128, 8
    $region29: #{tpu_custom_call.1} parent=1 // pred_fallthru
      _
    // Predicated region
    $region30: #{tpu_custom_call.1} parent=1 // pred_check
      _
    $region31: #{tpu_custom_call.1} parent=1 // pred_check_branch
      %81 = sbr.rel (0) target = $region33
    $region32: #{tpu_custom_call.1} parent=1 // pred_region
      _
    $region33: #{tpu_custom_call.1} parent=1 // pred_fallthru
      _
    // Predicated region
    $region34: #{tpu_custom_call.1} parent=1 // pred_check
      _
    $region35: #{tpu_custom_call.1} parent=1 // pred_check_branch
      %83 = sbr.rel (0) target = $region37
    $region36: #{tpu_custom_call.1} parent=1 // pred_region
      %84 = dma.done [#allocation3], 128
    $region37: #{tpu_custom_call.1} parent=1 // pred_fallthru
      _
    // Predicated region
    $region38: #{tpu_custom_call.1} parent=1 // pred_check
      _
    $region39: #{tpu_custom_call.1} parent=1 // pred_check_branch
      %86 = sbr.rel (0) target = $region41
    $region40: #{tpu_custom_call.1} parent=1 // pred_region
      %87 = dma.done [#allocation6], 128
    $region41: #{tpu_custom_call.1} parent=1 // pred_fallthru
      _
    // Predicated region
    $region42: #{tpu_custom_call.1} parent=1 // pred_check
      _
    $region43: #{tpu_custom_call.1} parent=1 // pred_check_branch
      %89 = sbr.rel (0) target = $region45
    $region44: #{tpu_custom_call.1} parent=1 // pred_region
      %90 = dma.done [#allocation6], 1024
    $region45: #{tpu_custom_call.1} parent=1 // pred_fallthru
      _
    // Predicated region
    $region46: #{tpu_custom_call.1} parent=1 // pred_check
      _
    $region47: #{tpu_custom_call.1} parent=1 // pred_check_branch
      %92 = sbr.rel (0) target = $region49
    $region48: #{tpu_custom_call.1} parent=1 // pred_region
      %93 = dma.done [#allocation9], 1024
    $region49: #{tpu_custom_call.1} parent=1 // pred_fallthru
      _
    // Predicated region
    $region50: #{tpu_custom_call.1} parent=1 // pred_check
      _
    $region51: #{tpu_custom_call.1} parent=1 // pred_check_branch
      %95 = sbr.rel (0) target = $region53
    $region52: #{tpu_custom_call.1} parent=1 // pred_region
      %96 = dma.done [#allocation9], 512
    $region53: #{tpu_custom_call.1} parent=1 // pred_fallthru
      _
    %v97 = vld [vmem:[#allocation5] sm:$0xff]
    %v98 = vld [vmem:[#allocation2] sm:$0xff]
    %v99 = vld [vmem:[#allocation7] sm:$0xff]
    %v100 = vld [vmem:[#allocation7 + $0x8] sm:$0xff]
    %v101 = vld [vmem:[#allocation7 + $0x10] sm:$0xff]
    %v102 = vld [vmem:[#allocation7 + $0x18] sm:$0xff]
    %v103 = vld [vmem:[#allocation7 + $0x20] sm:$0xff]
    %v104 = vld [vmem:[#allocation7 + $0x28] sm:$0xff]
    %v105 = vld [vmem:[#allocation7 + $0x30] sm:$0xff]
    %v106 = vld [vmem:[#allocation7 + $0x38] sm:$0xff]
    %v107 = vld [vmem:[%s3] sm:$0x1]
    %109 = vrot.lane.b32.xlu0 %v97, 32
    %v110 = vpop.permute.xlu0 %109
    %vm112 = vcmask 261120
    %v113 = vsel %vm112, %v98, %v110
    %v115 = vlaneseq
    %v116 = vshrl.u32 %v115, 7
    %v117 = vsub.s32 0, %v116
    %v118 = vrot.slane %v107, %v117
    %vm120 = vcmask 523264
    %v122 = vsel %vm120, %v113, 0
    %124 = vmatprep.subr.mxu0 0.0
    %125 = vmatpush1.msra.mxu0 0.0
    %126 = vmatprep.subr.mxu0 0.0
    %127 = vmatpush1.msra.mxu0 0.0
    %128 = vmatprep.subr.mxu0 0.0
    %129 = vmatpush1.msra.mxu0 0.0
    %130 = vmatprep.subr.mxu0 0.0
    %131 = vmatpush1.msra.mxu0 0.0
    %132 = vmatprep.subr.mxu0 0.0
    %133 = vmatpush1.msra.mxu0 0.0
    %134 = vmatprep.subr.mxu0 0.0
    %135 = vmatpush1.msra.mxu0 0.0
    %136 = vmatprep.subr.mxu0 0.0
    %137 = vmatpush1.msra.mxu0 0.0
    %138 = vmatprep.subr.mxu0 0.0
    %139 = vmatpush1.msra.mxu0 0.0
    %140 = vmatprep.subr.mxu0 0.0
    %141 = vmatpush1.msra.mxu0 %v106
    %142 = vmatprep.subr.mxu0 0.0
    %143 = vmatpush1.msra.mxu0 %v105
    %144 = vmatprep.subr.mxu0 0.0
    %145 = vmatpush1.msra.mxu0 %v104
    %146 = vmatprep.subr.mxu0 0.0
    %147 = vmatpush1.msra.mxu0 %v103
    %148 = vmatprep.subr.mxu0 0.0
    %149 = vmatpush1.msra.mxu0 %v102
    %150 = vmatprep.subr.mxu0 0.0
    %151 = vmatpush1.msra.mxu0 %v101
    %152 = vmatprep.subr.mxu0 0.0
    %153 = vmatpush1.msra.mxu0 %v100
    %154 = vmatprep.subr.mxu0 0.0
    %155 = vmatpush1.msra.mxu0 %v99
    %156 = vmatprep.subr.mxu0 0.0
    %157 = vmatpush2.msra.mxu0 0.0
    %158 = vmatprep.subr.mxu0 0.0
    %159 = vmatpush2.msra.mxu0 0.0
    %160 = vmatprep.subr.mxu0 0.0
    %161 = vmatpush2.msra.mxu0 0.0
    %162 = vmatprep.subr.mxu0 0.0
    %163 = vmatpush2.msra.mxu0 0.0
    %164 = vmatprep.subr.mxu0 0.0
    %165 = vmatpush2.msra.mxu0 0.0
    %166 = vmatprep.subr.mxu0 0.0
    %167 = vmatpush2.msra.mxu0 0.0
    %168 = vmatprep.subr.mxu0 0.0
    %169 = vmatpush2.msra.mxu0 0.0
    %170 = vmatprep.subr.mxu0 0.0
    %171 = vmatpush2.msra.mxu0 0.0
    %172 = vmatprep.subr.mxu0 0.0
    %173 = vmatpush2.msra.mxu0 0.0
    %174 = vmatprep.subr.mxu0 0.0
    %175 = vmatpush2.msra.mxu0 0.0
    %176 = vmatprep.subr.mxu0 0.0
    %177 = vmatpush2.msra.mxu0 0.0
    %178 = vmatprep.subr.mxu0 0.0
    %179 = vmatpush2.msra.mxu0 0.0
    %180 = vmatprep.subr.mxu0 0.0
    %181 = vmatpush2.msra.mxu0 0.0
    %182 = vmatprep.subr.mxu0 0.0
    %183 = vmatpush2.msra.mxu0 0.0
    %184 = vmatprep.subr.mxu0 0.0
    %185 = vmatpush2.msra.mxu0 0.0
    %186 = vmatprep.subr.mxu0 0.0
    %187 = vmatpush2.msra.mxu0 0.0
    %188 = vmatprep.mubr.f32.mxu0 0.0
    %189 = vmatmul.mubr.f32.gmra.mxu0 %v122
    %v190 = vpop.f32.mrf.mxu0
    %v191 = vadd.f32 %v118, %v190
    %v192 = vpop.f32.mrf.mxu0
    %193 = vdwg.mxu0
    %v194 = vlaneseq
    %v195 = vand.u32 %v194, 127
    %vm196 = vcmp.ge.s32.totalorder %v195, 64
    %vm197 = vcmp.lt.s32.totalorder %v195, 96
    %vm198 = vmand %vm196, %vm197
    %v199 = vmul.f32 %v191, 0.5
    %v200 = vsel %vm198, %v191, %v199
    %v201 = vtanh.pop %v200
    %v202 = vmul.f32 %v201, 0.5
    %v203 = vadd.f32 %v202, 0.5
    %v204 = vsel %vm198, %v201, %v203
    %205 = vrot.lane.b32.xlu0 %v97, 96
    %v206 = vpop.permute.xlu0 %205
    %v208 = vmul.f32 %v204, %v206
    %210 = vrot.lane.b32.xlu0 %v204, 64
    %v211 = vpop.permute.xlu0 %210
    %v213 = vmul.f32 %v204, %v211
    %215 = vrot.lane.b32.xlu0 %v213, 32
    %v216 = vpop.permute.xlu0 %215
    %v218 = vadd.f32 %v208, %v216
    %v219 = vtanh.pop %v218
    %221 = vrot.lane.b32.xlu0 %v219, 64
    %v222 = vpop.permute.xlu0 %221
    %v224 = vmul.f32 %v204, %v222
    %v225 = vld [vmem:[#allocation8] sm:$0xff]
    %v226 = vld [vmem:[#allocation8 + $0x8] sm:$0xff]
    %v227 = vld [vmem:[#allocation8 + $0x10] sm:$0xff]
    %v228 = vld [vmem:[#allocation8 + $0x18] sm:$0xff]
    %v229 = vld [vmem:[#allocation8 + $0x20] sm:$0xff]
    %v230 = vld [vmem:[#allocation8 + $0x28] sm:$0xff]
    %v231 = vld [vmem:[#allocation8 + $0x30] sm:$0xff]
    %v232 = vld [vmem:[#allocation8 + $0x38] sm:$0xff]
    %v233 = vld [vmem:[%s5] sm:$0x1]
    %235 = vrot.lane.b32.xlu0 %v224, 32
    %v236 = vpop.permute.xlu0 %235
    %v238 = vsel %vm112, %v236, %v97
    %v240 = vlaneseq
    %v241 = vshrl.u32 %v240, 7
    %v242 = vsub.s32 0, %v241
    %v243 = vrot.slane %v233, %v242
    %v246 = vsel %vm120, %v238, 0
    %248 = vmatprep.subr.mxu0 0.0
    %249 = vmatpush1.msra.mxu0 0.0
    %250 = vmatprep.subr.mxu0 0.0
    %251 = vmatpush1.msra.mxu0 0.0
    %252 = vmatprep.subr.mxu0 0.0
    %253 = vmatpush1.msra.mxu0 0.0
    %254 = vmatprep.subr.mxu0 0.0
    %255 = vmatpush1.msra.mxu0 0.0
    %256 = vmatprep.subr.mxu0 0.0
    %257 = vmatpush1.msra.mxu0 0.0
    %258 = vmatprep.subr.mxu0 0.0
    %259 = vmatpush1.msra.mxu0 0.0
    %260 = vmatprep.subr.mxu0 0.0
    %261 = vmatpush1.msra.mxu0 0.0
    %262 = vmatprep.subr.mxu0 0.0
    %263 = vmatpush1.msra.mxu0 0.0
    %264 = vmatprep.subr.mxu0 0.0
    %265 = vmatpush1.msra.mxu0 %v232
    %266 = vmatprep.subr.mxu0 0.0
    %267 = vmatpush1.msra.mxu0 %v231
    %268 = vmatprep.subr.mxu0 0.0
    %269 = vmatpush1.msra.mxu0 %v230
    %270 = vmatprep.subr.mxu0 0.0
    %271 = vmatpush1.msra.mxu0 %v229
    %272 = vmatprep.subr.mxu0 0.0
    %273 = vmatpush1.msra.mxu0 %v228
    %274 = vmatprep.subr.mxu0 0.0
    %275 = vmatpush1.msra.mxu0 %v227
    %276 = vmatprep.subr.mxu0 0.0
    %277 = vmatpush1.msra.mxu0 %v226
    %278 = vmatprep.subr.mxu0 0.0
    %279 = vmatpush1.msra.mxu0 %v225
    %280 = vmatprep.subr.mxu0 0.0
    %281 = vmatpush2.msra.mxu0 0.0
    %282 = vmatprep.subr.mxu0 0.0
    %283 = vmatpush2.msra.mxu0 0.0
    %284 = vmatprep.subr.mxu0 0.0
    %285 = vmatpush2.msra.mxu0 0.0
    %286 = vmatprep.subr.mxu0 0.0
    %287 = vmatpush2.msra.mxu0 0.0
    %288 = vmatprep.subr.mxu0 0.0
    %289 = vmatpush2.msra.mxu0 0.0
    %290 = vmatprep.subr.mxu0 0.0
    %291 = vmatpush2.msra.mxu0 0.0
    %292 = vmatprep.subr.mxu0 0.0
    %293 = vmatpush2.msra.mxu0 0.0
    %294 = vmatprep.subr.mxu0 0.0
    %295 = vmatpush2.msra.mxu0 0.0
    %296 = vmatprep.subr.mxu0 0.0
    %297 = vmatpush2.msra.mxu0 0.0
    %298 = vmatprep.subr.mxu0 0.0
    %299 = vmatpush2.msra.mxu0 0.0
    %300 = vmatprep.subr.mxu0 0.0
    %301 = vmatpush2.msra.mxu0 0.0
    %302 = vmatprep.subr.mxu0 0.0
    %303 = vmatpush2.msra.mxu0 0.0
    %304 = vmatprep.subr.mxu0 0.0
    %305 = vmatpush2.msra.mxu0 0.0
    %306 = vmatprep.subr.mxu0 0.0
    %307 = vmatpush2.msra.mxu0 0.0
    %308 = vmatprep.subr.mxu0 0.0
    %309 = vmatpush2.msra.mxu0 0.0
    %310 = vmatprep.subr.mxu0 0.0
    %311 = vmatpush2.msra.mxu0 0.0
    %312 = vmatprep.mubr.f32.mxu0 0.0
    %313 = vmatmul.mubr.f32.gmra.mxu0 %v246
    %v314 = vpop.f32.mrf.mxu0
    %v315 = vadd.f32 %v243, %v314
    %v316 = vpop.f32.mrf.mxu0
    %317 = vdwg.mxu0
    %v318 = vmul.f32 %v315, 0.5
    %v319 = vsel %vm198, %v315, %v318
    %v320 = vtanh.pop %v319
    %v321 = vmul.f32 %v320, 0.5
    %v322 = vadd.f32 %v321, 0.5
    %v323 = vsel %vm198, %v320, %v322
    %324 = vrot.lane.b32.xlu0 %v97, 64
    %v325 = vpop.permute.xlu0 %324
    %v327 = vmul.f32 %v323, %v325
    %329 = vrot.lane.b32.xlu0 %v323, 64
    %v330 = vpop.permute.xlu0 %329
    %v332 = vmul.f32 %v323, %v330
    %334 = vrot.lane.b32.xlu0 %v332, 32
    %v335 = vpop.permute.xlu0 %334
    %v337 = vadd.f32 %v327, %v335
    %v338 = vtanh.pop %v337
    %340 = vrot.lane.b32.xlu0 %v338, 64
    %v341 = vpop.permute.xlu0 %340
    %v343 = vmul.f32 %v323, %v341
    %345 = vrot.lane.b32.xlu0 %v343, 64
    %v346 = vpop.permute.xlu0 %345
    %349 = vrot.lane.b32.xlu0 %v218, 32
    %v350 = vpop.permute.xlu0 %349
    %353 = vrot.lane.b32.xlu0 %v337, 64
    %v354 = vpop.permute.xlu0 %353
    %v356 = vsel %vm112, %v236, %v346
    %v357 = vsel %vm120, %v356, %v350
    %vm358 = vcmask 785408
    %v359 = vsel %vm358, %v357, %v354
    %360 = vst [vmem:[#allocation12] sm:$0xff] %v359
    %v361 = vld [vmem:[#allocation10] sm:$0xff]
    %v362 = vld [vmem:[#allocation10 + $0x8] sm:$0xff]
    %v363 = vld [vmem:[#allocation10 + $0x10] sm:$0xff]
    %v364 = vld [vmem:[#allocation10 + $0x18] sm:$0xff]
    %v365 = vld [vmem:[%s7] sm:$0x1]
    %v367 = vlaneseq
    %v368 = vshrl.u32 %v367, 7
    %v369 = vsub.s32 0, %v368
    %v370 = vrot.slane %v365, %v369
    %372 = vrot.lane.b32.xlu0 %v343, 32
    %v373 = vpop.permute.xlu0 %372
    %v374 = vsel %vm112, %v373, 0
    %376 = vmatprep.subr.mxu0 0.0
    %377 = vmatpush1.msra.mxu0 0.0
    %378 = vmatprep.subr.mxu0 0.0
    %379 = vmatpush1.msra.mxu0 0.0
    %380 = vmatprep.subr.mxu0 0.0
    %381 = vmatpush1.msra.mxu0 0.0
    %382 = vmatprep.subr.mxu0 0.0
    %383 = vmatpush1.msra.mxu0 0.0
    %384 = vmatprep.subr.mxu0 0.0
    %385 = vmatpush1.msra.mxu0 0.0
    %386 = vmatprep.subr.mxu0 0.0
    %387 = vmatpush1.msra.mxu0 0.0
    %388 = vmatprep.subr.mxu0 0.0
    %389 = vmatpush1.msra.mxu0 0.0
    %390 = vmatprep.subr.mxu0 0.0
    %391 = vmatpush1.msra.mxu0 0.0
    %392 = vmatprep.subr.mxu0 0.0
    %393 = vmatpush1.msra.mxu0 0.0
    %394 = vmatprep.subr.mxu0 0.0
    %395 = vmatpush1.msra.mxu0 0.0
    %396 = vmatprep.subr.mxu0 0.0
    %397 = vmatpush1.msra.mxu0 0.0
    %398 = vmatprep.subr.mxu0 0.0
    %399 = vmatpush1.msra.mxu0 0.0
    %400 = vmatprep.subr.mxu0 0.0
    %401 = vmatpush1.msra.mxu0 %v364
    %402 = vmatprep.subr.mxu0 0.0
    %403 = vmatpush1.msra.mxu0 %v363
    %404 = vmatprep.subr.mxu0 0.0
    %405 = vmatpush1.msra.mxu0 %v362
    %406 = vmatprep.subr.mxu0 0.0
    %407 = vmatpush1.msra.mxu0 %v361
    %408 = vmatprep.subr.mxu0 0.0
    %409 = vmatpush2.msra.mxu0 0.0
    %410 = vmatprep.subr.mxu0 0.0
    %411 = vmatpush2.msra.mxu0 0.0
    %412 = vmatprep.subr.mxu0 0.0
    %413 = vmatpush2.msra.mxu0 0.0
    %414 = vmatprep.subr.mxu0 0.0
    %415 = vmatpush2.msra.mxu0 0.0
    %416 = vmatprep.subr.mxu0 0.0
    %417 = vmatpush2.msra.mxu0 0.0
    %418 = vmatprep.subr.mxu0 0.0
    %419 = vmatpush2.msra.mxu0 0.0
    %420 = vmatprep.subr.mxu0 0.0
    %421 = vmatpush2.msra.mxu0 0.0
    %422 = vmatprep.subr.mxu0 0.0
    %423 = vmatpush2.msra.mxu0 0.0
    %424 = vmatprep.subr.mxu0 0.0
    %425 = vmatpush2.msra.mxu0 0.0
    %426 = vmatprep.subr.mxu0 0.0
    %427 = vmatpush2.msra.mxu0 0.0
    %428 = vmatprep.subr.mxu0 0.0
    %429 = vmatpush2.msra.mxu0 0.0
    %430 = vmatprep.subr.mxu0 0.0
    %431 = vmatpush2.msra.mxu0 0.0
    %432 = vmatprep.subr.mxu0 0.0
    %433 = vmatpush2.msra.mxu0 0.0
    %434 = vmatprep.subr.mxu0 0.0
    %435 = vmatpush2.msra.mxu0 0.0
    %436 = vmatprep.subr.mxu0 0.0
    %437 = vmatpush2.msra.mxu0 0.0
    %438 = vmatprep.subr.mxu0 0.0
    %439 = vmatpush2.msra.mxu0 0.0
    %440 = vmatprep.mubr.f32.mxu0 0.0
    %441 = vmatmul.mubr.f32.gmra.mxu0 %v374
    %v442 = vpop.f32.mrf.mxu0
    %v443 = vadd.f32 %v370, %v442
    %v444 = vpop.f32.mrf.mxu0
    %445 = vdwg.mxu0
    %446 = vst [vmem:[#allocation11] sm:$0xff] %v443
    // Predicated region
    $region54: #{tpu_custom_call.1} parent=1 // pred_check
      _
    $region55: #{tpu_custom_call.1} parent=1 // pred_check_branch
      %448 = sbr.rel (0) target = $region57
    $region56: #{tpu_custom_call.1} parent=1 // pred_region
      %s450 = ssub.s32 128, 128
      %451 = vsyncadd [#allocation4], %s450
      %s453 = sshll.u32 [#allocation11], 4
      %s454 = int_to_ptr.vmem [resolvable:$true] %s453
      %456 = dma.vmem_to_hbm [thread:$0]  %s454, 128, %s8, [#allocation4]
    $region57: #{tpu_custom_call.1} parent=1 // pred_fallthru
      _
    // Predicated region
    $region58: #{tpu_custom_call.1} parent=1 // pred_check
      _
    $region59: #{tpu_custom_call.1} parent=1 // pred_check_branch
      %458 = sbr.rel (0) target = $region61
    $region60: #{tpu_custom_call.1} parent=1 // pred_region
      %s460 = ssub.s32 128, 128
      %461 = vsyncadd [#allocation13], %s460
      %s463 = sshll.u32 [#allocation12], 4
      %s464 = int_to_ptr.vmem [resolvable:$true] %s463
      %466 = dma.vmem_to_hbm [thread:$0]  %s464, 128, %s9, [#allocation13]
    $region61: #{tpu_custom_call.1} parent=1 // pred_fallthru
      _
    // Predicated region
    $region62: #{tpu_custom_call.1} parent=1 // pred_check
      _
    $region63: #{tpu_custom_call.1} parent=1 // pred_check_branch
      %468 = sbr.rel (0) target = $region65
    $region64: #{tpu_custom_call.1} parent=1 // pred_region
      %469 = dma.done [#allocation4], 128
    $region65: #{tpu_custom_call.1} parent=1 // pred_fallthru
      _
    // Predicated region
    $region66: #{tpu_custom_call.1} parent=1 // pred_check
      _
    $region67: #{tpu_custom_call.1} parent=1 // pred_check_branch
      %471 = sbr.rel (0) target = $region69
    $region68: #{tpu_custom_call.1} parent=1 // pred_region
      %472 = dma.done [#allocation13], 128
    $region69: #{tpu_custom_call.1} parent=1 // pred_fallthru
      _
    %473 = vsyncpa [#allocation3], 1
    %474 = vsyncpa [#allocation6], 1
    %475 = vsyncpa [#allocation9], 1
    %476 = vsyncpa [#allocation4], 1
    %477 = vsyncpa [#allocation13], 1

</llo_original>
